<compile_context>
chip_gen: v6e
topology: v6e:2x2x1
jax: 0.10.0
libtpu: 0.0.40
codegen_flags: <defaults>
</compile_context>

<pallas_src>
import jax
import jax.numpy as jnp
from jax.experimental import pallas as pl
from jax.experimental.pallas import tpu as pltpu


def _round_up(x, m):
    return (x + m - 1) // m * m


def _rotate_kernel(scal_ref, pos_ref, quat_ref, out_pos_ref, out_quat_ref):
    # scal_ref: (B, 8) f32 in SMEM  [hip_x, hip_z, qw, qx, qy, qz, 0, 0]
    # pos_ref:  (3, row_tile, 128)   quat_ref: (4, row_tile, 128)
    b = pl.program_id(0)
    f32 = jnp.float32
    pdt = out_pos_ref.dtype
    qdt = out_quat_ref.dtype

    # Per-batch scalars straight from SMEM (splatted by Mosaic; no broadcast planes).
    hip_x = scal_ref[b, 0]
    hip_z = scal_ref[b, 1]
    qw = scal_ref[b, 2]
    qx = scal_ref[b, 3]
    qy = scal_ref[b, 4]
    qz = scal_ref[b, 5]

    # Hip-centering of x/z for all joints, on full (row_tile, 128) slabs, f32 math.
    px = pos_ref[0].astype(f32) - hip_x
    py = pos_ref[1].astype(f32)
    pz = pos_ref[2].astype(f32) - hip_z

    # quaternion_apply(q, p) for unit q via the cross-product form:
    #   t = 2 * (q_vec x p);   p' = p + qw * t + q_vec x t
    tx = 2.0 * (qy * pz - qz * py)
    ty = 2.0 * (qz * px - qx * pz)
    tz = 2.0 * (qx * py - qy * px)
    out_pos_ref[0] = (px + qw * tx + (qy * tz - qz * ty)).astype(pdt)
    out_pos_ref[1] = (py + qw * ty + (qz * tx - qx * tz)).astype(pdt)
    out_pos_ref[2] = (pz + qw * tz + (qx * ty - qy * tx)).astype(pdt)

    # quaternion_multiply(q, g)   (raw Hamilton product)
    gw = quat_ref[0].astype(f32)
    gx = quat_ref[1].astype(f32)
    gy = quat_ref[2].astype(f32)
    gz = quat_ref[3].astype(f32)
    out_quat_ref[0] = (qw * gw - qx * gx - qy * gy - qz * gz).astype(qdt)
    out_quat_ref[1] = (qw * gx + qx * gw + qy * gz - qz * gy).astype(qdt)
    out_quat_ref[2] = (qw * gy - qx * gz + qy * gw + qz * gx).astype(qdt)
    out_quat_ref[3] = (qw * gz + qx * gy - qy * gx + qz * gw).astype(qdt)


def _precompute_scalars(global_positions, ref_frame_id):
    """Tiny pure-JAX pre-pass: per-batch hip mean + root rotation quaternion (f32)."""
    pos = global_positions.astype(jnp.float32)
    d = pos[:, ref_frame_id, 5, :] - pos[:, ref_frame_id, 1, :]          # (B, 3)
    # cross(d, (0,1,0)) = (-d_z, 0, d_x)
    vx = -d[:, 2]
    vy = jnp.zeros_like(vx)
    vz = d[:, 0]
    inv_n = jax.lax.rsqrt(vx * vx + vy * vy + vz * vz)
    nx, ny, nz = vx * inv_n, vy * inv_n, vz * inv_n
    # from_to_1_0_0: q_raw = (1 + n.(1,0,0), n x (1,0,0)) = (1+nx, 0, nz, -ny), normalized
    qw = 1.0 + nx
    qx = jnp.zeros_like(nx)
    qy = nz
    qz = -ny
    inv_qn = jax.lax.rsqrt(qw * qw + qx * qx + qy * qy + qz * qz)
    qw, qx, qy, qz = qw * inv_qn, qx * inv_qn, qy * inv_qn, qz * inv_qn
    hip_x = jnp.mean(pos[:, :, 0, 0], axis=1)
    hip_z = jnp.mean(pos[:, :, 0, 2], axis=1)
    pad = jnp.zeros_like(qw)
    return jnp.stack([hip_x, hip_z, qw, qx, qy, qz, pad, pad], axis=-1)   # (B, 8) f32


def batch_rotate_y_center_xz(global_positions, global_quats, ref_frame_id):
    """global_positions: (B, T, J, 3), global_quats: (B, T, J, 4), ref_frame_id: int."""
    B, T, J, _ = global_positions.shape
    ref_frame_id = int(ref_frame_id)
    N = T * J

    # --- Tiling: pack the flattened (T*J) axis into full (rows, 128) slabs. ---
    n_rows = -(-N // 128)
    ROW_TILE_CAP = 1024                                   # ~3.5 MiB f32 input per grid step
    num_row_tiles = max(1, -(-n_rows // ROW_TILE_CAP))
    if B == 1 and n_rows >= 16:
        num_row_tiles = max(num_row_tiles, 2)             # >=2 parallel steps for v7x's 2 TCs
    row_tile = _round_up(-(-n_rows // num_row_tiles), 8)  # sublane-aligned
    n_rows_pad = row_tile * num_row_tiles
    n_pad = n_rows_pad * 128

    # Component-major, sublane+lane dense layout: (B, C, n_rows_pad, 128).
    pos_t = jnp.transpose(global_positions, (0, 3, 1, 2)).reshape(B, 3, N)
    quat_t = jnp.transpose(global_quats, (0, 3, 1, 2)).reshape(B, 4, N)
    if n_pad != N:
        pos_t = jnp.pad(pos_t, ((0, 0), (0, 0), (0, n_pad - N)))
        quat_t = jnp.pad(quat_t, ((0, 0), (0, 0), (0, n_pad - N)))
    pos_t = pos_t.reshape(B, 3, n_rows_pad, 128)
    quat_t = quat_t.reshape(B, 4, n_rows_pad, 128)

    scal = _precompute_scalars(global_positions, ref_frame_id)            # (B, 8) f32

    # VMEM budget: double-buffered in + out, sized from the actual block, with headroom,
    # kept well under v7x's 64 MiB physical VMEM.
    itemsize = jnp.dtype(global_positions.dtype).itemsize
    block_bytes = (3 + 4) * row_tile * 128 * itemsize                     # one buffer (in or out)
    vmem_limit = int(min(56 << 20, max(4 * block_bytes + (2 << 20), 16 << 20)))

    out_pos_t, out_quat_t = pl.pallas_call(
        _rotate_kernel,
        out_shape=(
            jax.ShapeDtypeStruct((B, 3, n_rows_pad, 128), pos_t.dtype),
            jax.ShapeDtypeStruct((B, 4, n_rows_pad, 128), quat_t.dtype),
        ),
        grid_spec=pltpu.PrefetchScalarGridSpec(
            num_scalar_prefetch=1,
            grid=(B, num_row_tiles),
            in_specs=[
                pl.BlockSpec((None, 3, row_tile, 128), lambda b, n, scal: (b, 0, n, 0)),
                pl.BlockSpec((None, 4, row_tile, 128), lambda b, n, scal: (b, 0, n, 0)),
            ],
            out_specs=[
                pl.BlockSpec((None, 3, row_tile, 128), lambda b, n, scal: (b, 0, n, 0)),
                pl.BlockSpec((None, 4, row_tile, 128), lambda b, n, scal: (b, 0, n, 0)),
            ],
        ),
        compiler_params=pltpu.CompilerParams(
            dimension_semantics=("parallel", "parallel"),
            vmem_limit_bytes=vmem_limit,
        ),
    )(scal, pos_t, quat_t)

    out_pos = (out_pos_t.reshape(B, 3, n_pad)[:, :, :N]
               .reshape(B, 3, T, J).transpose(0, 2, 3, 1))                # (B, T, J, 3)
    out_quat = (out_quat_t.reshape(B, 4, n_pad)[:, :, :N]
                .reshape(B, 4, T, J).transpose(0, 2, 3, 1))               # (B, T, J, 4)
    return out_pos, out_quat


def _reference(global_positions, global_quats, ref_frame_id):
    """Pure-JAX reference with identical math, for validation."""
    pos = global_positions
    d = pos[:, ref_frame_id:ref_frame_id + 1, 5:6, :] - pos[:, ref_frame_id:ref_frame_id + 1, 1:2, :]
    ref_vec = jnp.stack([-d[..., 2], jnp.zeros_like(d[..., 0]), d[..., 0]], axis=-1)  # cross(d,(0,1,0))
    n = ref_vec / jnp.linalg.norm(ref_vec, axis=-1, keepdims=True)
    q = jnp.concatenate(
        [1.0 + n[..., 0:1], jnp.zeros_like(n[..., 0:1]), n[..., 2:3], -n[..., 1:2]], axis=-1)
    q = q / jnp.linalg.norm(q, axis=-1, keepdims=True)                    # (B,1,1,4)

    ref_hip = jnp.mean(pos[:, :, 0:1, :][..., jnp.array([0, 2])], axis=1, keepdims=True)
    pos = pos.at[..., 0].add(-ref_hip[..., 0]).at[..., 2].add(-ref_hip[..., 1])

    def raw_mul(a, b):
        aw, ax, ay, az = (a[..., i] for i in range(4))
        bw, bx, by, bz = (b[..., i] for i in range(4))
        return jnp.stack([
            aw * bw - ax * bx - ay * by - az * bz,
            aw * bx + ax * bw + ay * bz - az * by,
            aw * by - ax * bz + ay * bw + az * bx,
            aw * bz + ax * by - ay * bx + az * bw,
        ], axis=-1)

    p_quat = jnp.concatenate([jnp.zeros_like(pos[..., :1]), pos], axis=-1)
    q_conj = q * jnp.array([1.0, -1.0, -1.0, -1.0], dtype=q.dtype)
    qb = jnp.broadcast_to(q, pos.shape[:-1] + (4,))
    qcb = jnp.broadcast_to(q_conj, pos.shape[:-1] + (4,))
    out_pos = raw_mul(raw_mul(qb, p_quat), qcb)[..., 1:]
    qb2 = jnp.broadcast_to(q, global_quats.shape)
    out_quat = raw_mul(qb2, global_quats)
    return out_pos, out_quat


if __name__ == "__main__":
    B, T, J = 2, 32, 22          # small skeleton-like shapes (22 joints, 32 frames)
    ref_frame_id = 3

    key = jax.random.PRNGKey(0)
    k1, k2 = jax.random.split(key)
    global_positions = jax.random.normal(k1, (B, T, J, 3), dtype=jnp.float32) * 2.0
    global_quats = jax.random.normal(k2, (B, T, J, 4), dtype=jnp.float32)
    global_quats = global_quats / jnp.linalg.norm(global_quats, axis=-1, keepdims=True)

    out_pos, out_quat = batch_rotate_y_center_xz(global_positions, global_quats, ref_frame_id)
    out_pos = jax.block_until_ready(out_pos)
    out_quat = jax.block_until_ready(out_quat)

    ref_pos, ref_quat = _reference(global_positions, global_quats, ref_frame_id)
    assert jnp.allclose(out_pos, ref_pos, atol=1e-4, rtol=1e-4), "position mismatch"
    assert jnp.allclose(out_quat, ref_quat, atol=1e-4, rtol=1e-4), "quaternion mismatch"

    print("KERNEL_OK")
</pallas_src>

<mosaic_0001>
module attributes {stable_mosaic.version = 11 : i64} {
  func.func @_rotate_kernel(%arg0: i32, %arg1: i32, %arg2: memref<2x8xf32, #tpu.memory_space<smem>>, %arg3: memref<1x3x8x128xf32, #tpu.memory_space<vmem>>, %arg4: memref<1x4x8x128xf32, #tpu.memory_space<vmem>>, %arg5: memref<1x3x8x128xf32, #tpu.memory_space<vmem>>, %arg6: memref<1x4x8x128xf32, #tpu.memory_space<vmem>>) attributes {dimension_semantics = [#tpu.dimension_semantics<parallel>, #tpu.dimension_semantics<parallel>], iteration_bounds = array<i64: 2, 1>, scalar_prefetch = 1 : i64, scratch_operands = 0 : i64, tpu.core_type = #tpu.core_type<tc>, window_params = [{transform_indices = @transform_0, window_bounds = array<i64: 1, 3, 8, 128>}, {transform_indices = @transform_1, window_bounds = array<i64: 1, 4, 8, 128>}, {transform_indices = @transform_2, window_bounds = array<i64: 1, 3, 8, 128>}, {transform_indices = @transform_3, window_bounds = array<i64: 1, 4, 8, 128>}]} {
    %0 = arith.index_cast %arg0 : i32 to index
    %c0 = arith.constant 0 : index
    %1 = memref.load %arg2[%0, %c0] : memref<2x8xf32, #tpu.memory_space<smem>>
    %2 = arith.index_cast %arg0 : i32 to index
    %c1 = arith.constant 1 : index
    %3 = memref.load %arg2[%2, %c1] : memref<2x8xf32, #tpu.memory_space<smem>>
    %4 = arith.index_cast %arg0 : i32 to index
    %c2 = arith.constant 2 : index
    %5 = memref.load %arg2[%4, %c2] : memref<2x8xf32, #tpu.memory_space<smem>>
    %6 = arith.index_cast %arg0 : i32 to index
    %c3 = arith.constant 3 : index
    %7 = memref.load %arg2[%6, %c3] : memref<2x8xf32, #tpu.memory_space<smem>>
    %8 = arith.index_cast %arg0 : i32 to index
    %c4 = arith.constant 4 : index
    %9 = memref.load %arg2[%8, %c4] : memref<2x8xf32, #tpu.memory_space<smem>>
    %10 = arith.index_cast %arg0 : i32 to index
    %c5 = arith.constant 5 : index
    %11 = memref.load %arg2[%10, %c5] : memref<2x8xf32, #tpu.memory_space<smem>>
    %c0_0 = arith.constant 0 : index
    %c0_1 = arith.constant 0 : index
    %c0_2 = arith.constant 0 : index
    %c0_3 = arith.constant 0 : index
    %12 = vector.load %arg3[%c0_0, %c0_1, %c0_2, %c0_3] : memref<1x3x8x128xf32, #tpu.memory_space<vmem>>, vector<1x1x8x128xf32>
    %13 = vector.shape_cast %12 : vector<1x1x8x128xf32> to vector<8x128xf32>
    %14 = vector.broadcast %1 : f32 to vector<8x128xf32>
    %15 = arith.subf %13, %14 : vector<8x128xf32>
    %c0_4 = arith.constant 0 : index
    %c1_5 = arith.constant 1 : index
    %c0_6 = arith.constant 0 : index
    %c0_7 = arith.constant 0 : index
    %16 = vector.load %arg3[%c0_4, %c1_5, %c0_6, %c0_7] : memref<1x3x8x128xf32, #tpu.memory_space<vmem>>, vector<1x1x8x128xf32>
    %17 = vector.shape_cast %16 : vector<1x1x8x128xf32> to vector<8x128xf32>
    %c0_8 = arith.constant 0 : index
    %c2_9 = arith.constant 2 : index
    %c0_10 = arith.constant 0 : index
    %c0_11 = arith.constant 0 : index
    %18 = vector.load %arg3[%c0_8, %c2_9, %c0_10, %c0_11] : memref<1x3x8x128xf32, #tpu.memory_space<vmem>>, vector<1x1x8x128xf32>
    %19 = vector.shape_cast %18 : vector<1x1x8x128xf32> to vector<8x128xf32>
    %20 = vector.broadcast %3 : f32 to vector<8x128xf32>
    %21 = arith.subf %19, %20 : vector<8x128xf32>
    %22 = vector.broadcast %9 : f32 to vector<8x128xf32>
    %23 = arith.mulf %22, %21 : vector<8x128xf32>
    %24 = vector.broadcast %11 : f32 to vector<8x128xf32>
    %25 = arith.mulf %24, %17 : vector<8x128xf32>
    %26 = arith.subf %23, %25 : vector<8x128xf32>
    %cst = arith.constant 2.000000e+00 : f32
    %27 = vector.broadcast %cst : f32 to vector<8x128xf32>
    %28 = arith.mulf %27, %26 : vector<8x128xf32>
    %29 = vector.broadcast %11 : f32 to vector<8x128xf32>
    %30 = arith.mulf %29, %15 : vector<8x128xf32>
    %31 = vector.broadcast %7 : f32 to vector<8x128xf32>
    %32 = arith.mulf %31, %21 : vector<8x128xf32>
    %33 = arith.subf %30, %32 : vector<8x128xf32>
    %cst_12 = arith.constant 2.000000e+00 : f32
    %34 = vector.broadcast %cst_12 : f32 to vector<8x128xf32>
    %35 = arith.mulf %34, %33 : vector<8x128xf32>
    %36 = vector.broadcast %7 : f32 to vector<8x128xf32>
    %37 = arith.mulf %36, %17 : vector<8x128xf32>
    %38 = vector.broadcast %9 : f32 to vector<8x128xf32>
    %39 = arith.mulf %38, %15 : vector<8x128xf32>
    %40 = arith.subf %37, %39 : vector<8x128xf32>
    %cst_13 = arith.constant 2.000000e+00 : f32
    %41 = vector.broadcast %cst_13 : f32 to vector<8x128xf32>
    %42 = arith.mulf %41, %40 : vector<8x128xf32>
    %43 = vector.broadcast %5 : f32 to vector<8x128xf32>
    %44 = arith.mulf %43, %28 : vector<8x128xf32>
    %45 = arith.addf %15, %44 : vector<8x128xf32>
    %46 = vector.broadcast %9 : f32 to vector<8x128xf32>
    %47 = arith.mulf %46, %42 : vector<8x128xf32>
    %48 = vector.broadcast %11 : f32 to vector<8x128xf32>
    %49 = arith.mulf %48, %35 : vector<8x128xf32>
    %50 = arith.subf %47, %49 : vector<8x128xf32>
    %51 = arith.addf %45, %50 : vector<8x128xf32>
    %c0_14 = arith.constant 0 : index
    %c0_15 = arith.constant 0 : index
    %c0_16 = arith.constant 0 : index
    %c0_17 = arith.constant 0 : index
    %52 = vector.load %arg5[%c0_14, %c0_15, %c0_16, %c0_17] : memref<1x3x8x128xf32, #tpu.memory_space<vmem>>, vector<1x1x8x128xf32>
    %53 = vector.shape_cast %52 : vector<1x1x8x128xf32> to vector<8x128xf32>
    %54 = vector.shape_cast %51 : vector<8x128xf32> to vector<1x1x8x128xf32>
    tpu.vector_store %arg5[%c0_14, %c0_15, %c0_16, %c0_17], %54 {strides = array<i32>} : memref<1x3x8x128xf32, #tpu.memory_space<vmem>>, vector<1x1x8x128xf32>,
    %55 = vector.broadcast %5 : f32 to vector<8x128xf32>
    %56 = arith.mulf %55, %35 : vector<8x128xf32>
    %57 = arith.addf %17, %56 : vector<8x128xf32>
    %58 = vector.broadcast %11 : f32 to vector<8x128xf32>
    %59 = arith.mulf %58, %28 : vector<8x128xf32>
    %60 = vector.broadcast %7 : f32 to vector<8x128xf32>
    %61 = arith.mulf %60, %42 : vector<8x128xf32>
    %62 = arith.subf %59, %61 : vector<8x128xf32>
    %63 = arith.addf %57, %62 : vector<8x128xf32>
    %c0_18 = arith.constant 0 : index
    %c1_19 = arith.constant 1 : index
    %c0_20 = arith.constant 0 : index
    %c0_21 = arith.constant 0 : index
    %64 = vector.load %arg5[%c0_18, %c1_19, %c0_20, %c0_21] : memref<1x3x8x128xf32, #tpu.memory_space<vmem>>, vector<1x1x8x128xf32>
    %65 = vector.shape_cast %64 : vector<1x1x8x128xf32> to vector<8x128xf32>
    %66 = vector.shape_cast %63 : vector<8x128xf32> to vector<1x1x8x128xf32>
    tpu.vector_store %arg5[%c0_18, %c1_19, %c0_20, %c0_21], %66 {strides = array<i32>} : memref<1x3x8x128xf32, #tpu.memory_space<vmem>>, vector<1x1x8x128xf32>,
    %67 = vector.broadcast %5 : f32 to vector<8x128xf32>
    %68 = arith.mulf %67, %42 : vector<8x128xf32>
    %69 = arith.addf %21, %68 : vector<8x128xf32>
    %70 = vector.broadcast %7 : f32 to vector<8x128xf32>
    %71 = arith.mulf %70, %35 : vector<8x128xf32>
    %72 = vector.broadcast %9 : f32 to vector<8x128xf32>
    %73 = arith.mulf %72, %28 : vector<8x128xf32>
    %74 = arith.subf %71, %73 : vector<8x128xf32>
    %75 = arith.addf %69, %74 : vector<8x128xf32>
    %c0_22 = arith.constant 0 : index
    %c2_23 = arith.constant 2 : index
    %c0_24 = arith.constant 0 : index
    %c0_25 = arith.constant 0 : index
    %76 = vector.load %arg5[%c0_22, %c2_23, %c0_24, %c0_25] : memref<1x3x8x128xf32, #tpu.memory_space<vmem>>, vector<1x1x8x128xf32>
    %77 = vector.shape_cast %76 : vector<1x1x8x128xf32> to vector<8x128xf32>
    %78 = vector.shape_cast %75 : vector<8x128xf32> to vector<1x1x8x128xf32>
    tpu.vector_store %arg5[%c0_22, %c2_23, %c0_24, %c0_25], %78 {strides = array<i32>} : memref<1x3x8x128xf32, #tpu.memory_space<vmem>>, vector<1x1x8x128xf32>,
    %c0_26 = arith.constant 0 : index
    %c0_27 = arith.constant 0 : index
    %c0_28 = arith.constant 0 : index
    %c0_29 = arith.constant 0 : index
    %79 = vector.load %arg4[%c0_26, %c0_27, %c0_28, %c0_29] : memref<1x4x8x128xf32, #tpu.memory_space<vmem>>, vector<1x1x8x128xf32>
    %80 = vector.shape_cast %79 : vector<1x1x8x128xf32> to vector<8x128xf32>
    %c0_30 = arith.constant 0 : index
    %c1_31 = arith.constant 1 : index
    %c0_32 = arith.constant 0 : index
    %c0_33 = arith.constant 0 : index
    %81 = vector.load %arg4[%c0_30, %c1_31, %c0_32, %c0_33] : memref<1x4x8x128xf32, #tpu.memory_space<vmem>>, vector<1x1x8x128xf32>
    %82 = vector.shape_cast %81 : vector<1x1x8x128xf32> to vector<8x128xf32>
    %c0_34 = arith.constant 0 : index
    %c2_35 = arith.constant 2 : index
    %c0_36 = arith.constant 0 : index
    %c0_37 = arith.constant 0 : index
    %83 = vector.load %arg4[%c0_34, %c2_35, %c0_36, %c0_37] : memref<1x4x8x128xf32, #tpu.memory_space<vmem>>, vector<1x1x8x128xf32>
    %84 = vector.shape_cast %83 : vector<1x1x8x128xf32> to vector<8x128xf32>
    %c0_38 = arith.constant 0 : index
    %c3_39 = arith.constant 3 : index
    %c0_40 = arith.constant 0 : index
    %c0_41 = arith.constant 0 : index
    %85 = vector.load %arg4[%c0_38, %c3_39, %c0_40, %c0_41] : memref<1x4x8x128xf32, #tpu.memory_space<vmem>>, vector<1x1x8x128xf32>
    %86 = vector.shape_cast %85 : vector<1x1x8x128xf32> to vector<8x128xf32>
    %87 = vector.broadcast %5 : f32 to vector<8x128xf32>
    %88 = arith.mulf %87, %80 : vector<8x128xf32>
    %89 = vector.broadcast %7 : f32 to vector<8x128xf32>
    %90 = arith.mulf %89, %82 : vector<8x128xf32>
    %91 = arith.subf %88, %90 : vector<8x128xf32>
    %92 = vector.broadcast %9 : f32 to vector<8x128xf32>
    %93 = arith.mulf %92, %84 : vector<8x128xf32>
    %94 = arith.subf %91, %93 : vector<8x128xf32>
    %95 = vector.broadcast %11 : f32 to vector<8x128xf32>
    %96 = arith.mulf %95, %86 : vector<8x128xf32>
    %97 = arith.subf %94, %96 : vector<8x128xf32>
    %c0_42 = arith.constant 0 : index
    %c0_43 = arith.constant 0 : index
    %c0_44 = arith.constant 0 : index
    %c0_45 = arith.constant 0 : index
    %98 = vector.load %arg6[%c0_42, %c0_43, %c0_44, %c0_45] : memref<1x4x8x128xf32, #tpu.memory_space<vmem>>, vector<1x1x8x128xf32>
    %99 = vector.shape_cast %98 : vector<1x1x8x128xf32> to vector<8x128xf32>
    %100 = vector.shape_cast %97 : vector<8x128xf32> to vector<1x1x8x128xf32>
    tpu.vector_store %arg6[%c0_42, %c0_43, %c0_44, %c0_45], %100 {strides = array<i32>} : memref<1x4x8x128xf32, #tpu.memory_space<vmem>>, vector<1x1x8x128xf32>,
    %101 = vector.broadcast %5 : f32 to vector<8x128xf32>
    %102 = arith.mulf %101, %82 : vector<8x128xf32>
    %103 = vector.broadcast %7 : f32 to vector<8x128xf32>
    %104 = arith.mulf %103, %80 : vector<8x128xf32>
    %105 = arith.addf %102, %104 : vector<8x128xf32>
    %106 = vector.broadcast %9 : f32 to vector<8x128xf32>
    %107 = arith.mulf %106, %86 : vector<8x128xf32>
    %108 = arith.addf %105, %107 : vector<8x128xf32>
    %109 = vector.broadcast %11 : f32 to vector<8x128xf32>
    %110 = arith.mulf %109, %84 : vector<8x128xf32>
    %111 = arith.subf %108, %110 : vector<8x128xf32>
    %c0_46 = arith.constant 0 : index
    %c1_47 = arith.constant 1 : index
    %c0_48 = arith.constant 0 : index
    %c0_49 = arith.constant 0 : index
    %112 = vector.load %arg6[%c0_46, %c1_47, %c0_48, %c0_49] : memref<1x4x8x128xf32, #tpu.memory_space<vmem>>, vector<1x1x8x128xf32>
    %113 = vector.shape_cast %112 : vector<1x1x8x128xf32> to vector<8x128xf32>
    %114 = vector.shape_cast %111 : vector<8x128xf32> to vector<1x1x8x128xf32>
    tpu.vector_store %arg6[%c0_46, %c1_47, %c0_48, %c0_49], %114 {strides = array<i32>} : memref<1x4x8x128xf32, #tpu.memory_space<vmem>>, vector<1x1x8x128xf32>,
    %115 = vector.broadcast %5 : f32 to vector<8x128xf32>
    %116 = arith.mulf %115, %84 : vector<8x128xf32>
    %117 = vector.broadcast %7 : f32 to vector<8x128xf32>
    %118 = arith.mulf %117, %86 : vector<8x128xf32>
    %119 = arith.subf %116, %118 : vector<8x128xf32>
    %120 = vector.broadcast %9 : f32 to vector<8x128xf32>
    %121 = arith.mulf %120, %80 : vector<8x128xf32>
    %122 = arith.addf %119, %121 : vector<8x128xf32>
    %123 = vector.broadcast %11 : f32 to vector<8x128xf32>
    %124 = arith.mulf %123, %82 : vector<8x128xf32>
    %125 = arith.addf %122, %124 : vector<8x128xf32>
    %c0_50 = arith.constant 0 : index
    %c2_51 = arith.constant 2 : index
    %c0_52 = arith.constant 0 : index
    %c0_53 = arith.constant 0 : index
    %126 = vector.load %arg6[%c0_50, %c2_51, %c0_52, %c0_53] : memref<1x4x8x128xf32, #tpu.memory_space<vmem>>, vector<1x1x8x128xf32>
    %127 = vector.shape_cast %126 : vector<1x1x8x128xf32> to vector<8x128xf32>
    %128 = vector.shape_cast %125 : vector<8x128xf32> to vector<1x1x8x128xf32>
    tpu.vector_store %arg6[%c0_50, %c2_51, %c0_52, %c0_53], %128 {strides = array<i32>} : memref<1x4x8x128xf32, #tpu.memory_space<vmem>>, vector<1x1x8x128xf32>,
    %129 = vector.broadcast %5 : f32 to vector<8x128xf32>
    %130 = arith.mulf %129, %86 : vector<8x128xf32>
    %131 = vector.broadcast %7 : f32 to vector<8x128xf32>
    %132 = arith.mulf %131, %84 : vector<8x128xf32>
    %133 = arith.addf %130, %132 : vector<8x128xf32>
    %134 = vector.broadcast %9 : f32 to vector<8x128xf32>
    %135 = arith.mulf %134, %82 : vector<8x128xf32>
    %136 = arith.subf %133, %135 : vector<8x128xf32>
    %137 = vector.broadcast %11 : f32 to vector<8x128xf32>
    %138 = arith.mulf %137, %80 : vector<8x128xf32>
    %139 = arith.addf %136, %138 : vector<8x128xf32>
    %c0_54 = arith.constant 0 : index
    %c3_55 = arith.constant 3 : index
    %c0_56 = arith.constant 0 : index
    %c0_57 = arith.constant 0 : index
    %140 = vector.load %arg6[%c0_54, %c3_55, %c0_56, %c0_57] : memref<1x4x8x128xf32, #tpu.memory_space<vmem>>, vector<1x1x8x128xf32>
    %141 = vector.shape_cast %140 : vector<1x1x8x128xf32> to vector<8x128xf32>
    %142 = vector.shape_cast %139 : vector<8x128xf32> to vector<1x1x8x128xf32>
    tpu.vector_store %arg6[%c0_54, %c3_55, %c0_56, %c0_57], %142 {strides = array<i32>} : memref<1x4x8x128xf32, #tpu.memory_space<vmem>>, vector<1x1x8x128xf32>,
    return
  }
  func.func @transform_0(%arg0: i32, %arg1: i32, %arg2: memref<2x8xf32, #tpu.memory_space<smem>>) -> (i32, i32, i32, i32) {
    %c0_i32 = arith.constant 0 : i32
    %c0_i32_0 = arith.constant 0 : i32
    %c0_i32_1 = arith.constant 0 : i32
    return %arg0, %c0_i32, %arg1, %c0_i32_0 : i32, i32, i32, i32
  }
  func.func @transform_1(%arg0: i32, %arg1: i32, %arg2: memref<2x8xf32, #tpu.memory_space<smem>>) -> (i32, i32, i32, i32) {
    %c0_i32 = arith.constant 0 : i32
    %c0_i32_0 = arith.constant 0 : i32
    %c0_i32_1 = arith.constant 0 : i32
    return %arg0, %c0_i32, %arg1, %c0_i32_0 : i32, i32, i32, i32
  }
  func.func @transform_2(%arg0: i32, %arg1: i32, %arg2: memref<2x8xf32, #tpu.memory_space<smem>>) -> (i32, i32, i32, i32) {
    %c0_i32 = arith.constant 0 : i32
    %c0_i32_0 = arith.constant 0 : i32
    %c0_i32_1 = arith.constant 0 : i32
    return %arg0, %c0_i32, %arg1, %c0_i32_0 : i32, i32, i32, i32
  }
  func.func @transform_3(%arg0: i32, %arg1: i32, %arg2: memref<2x8xf32, #tpu.memory_space<smem>>) -> (i32, i32, i32, i32) {
    %c0_i32 = arith.constant 0 : i32
    %c0_i32_0 = arith.constant 0 : i32
    %c0_i32_1 = arith.constant 0 : i32
    return %arg0, %c0_i32, %arg1, %c0_i32_0 : i32, i32, i32, i32
  }
}

</mosaic_0001>

<llo_original>
// kernel: tpu_custom_call.1
$region0: #{tpu_custom_call.1}
  #allocation0 [shape = 'u32[]', space=smem, size = 0x4, offset = 0x4, fixed_abs, tag = 'smem constant byte address 0x4 - core index']
  #allocation1 [shape = 'u32[144,128]{1,0:T(1,128)}', space=vmem, size = 0x12000, scoped, tag = 'internal scratch']
  #allocation2 [shape = 's32[1]{0}', space=sflag, size = 0x4, scoped, tag = 'scoped memory for tpu_custom_call.1']
  #allocation3 [shape = 'u8[1024]{0}', space=smem, size = 0x400, scoped, tag = 'prefetched SMEM operand 0']
  %s0 = inlined_call_operand.hbm [shape: f32[2,8], index: 0, kind: input, shape index: {}]
  %s1 = inlined_call_operand.hbm [shape: f32[2,3,8,128], index: 1, kind: input, shape index: {}]
  %s2 = inlined_call_operand.hbm [shape: f32[2,4,8,128], index: 2, kind: input, shape index: {}]
  %s3 = inlined_call_operand.hbm [shape: f32[2,3,8,128], index: 3, kind: output, shape index: {0}]
  %s4 = inlined_call_operand.hbm [shape: f32[2,4,8,128], index: 4, kind: output, shape index: {1}]
  %5 = xla_tuple %s3, %s4
  %s6 = sld [smem:[#allocation0]]
  $region57: #{tpu_custom_call.1} parent=0
    _
  %s8 = ssub.s32 1, %s6
  %s9 = scalar_select 0, %s8, %s6
  %11 = dma.hbm_to_smem %s0, 32, [#allocation3], [#allocation2]
  %12 = dma.done [#allocation2], 32
  %13 = sfence
  $region1: #{tpu_custom_call.1} parent=0
    #allocation4 [shape = 'u8[24576]{0}', space=vmem, size = 0x6000, scoped, tag = 'input window, operand 1']
    #allocation5 [shape = 's32[2]{0}', space=sflag, size = 0x8, scoped, tag = 'scoped memory for tpu_custom_call.1']
    #allocation6 [shape = 's32[2]{0}', space=sflag, size = 0x8, scoped, tag = 'scoped memory for tpu_custom_call.1']
    #allocation7 [shape = 'u8[32768]{0}', space=vmem, size = 0x8000, scoped, tag = 'input window, operand 2']
    #allocation8 [shape = 's32[2]{0}', space=sflag, size = 0x8, scoped, tag = 'scoped memory for tpu_custom_call.1']
    #allocation9 [shape = 'u8[24576]{0}', space=vmem, size = 0x6000, scoped, tag = 'output window, operand 0']
    #allocation10 [shape = 'u8[32768]{0}', space=vmem, size = 0x8000, scoped, tag = 'output window, operand 1']
    #allocation11 [shape = 's32[2]{0}', space=sflag, size = 0x8, scoped, tag = 'scoped memory for tpu_custom_call.1']
    %14 = vsyncpa [#allocation5], 0
    %s15 = scalar_lea.sflag [#allocation5], 1
    %16 = vsyncpa %s15, 0
    %17 = vsyncpa [#allocation8], 0
    %s18 = scalar_lea.sflag [#allocation8], 1
    %19 = vsyncpa %s18, 0
    %20 = vsyncpa [#allocation6], 0
    %s21 = scalar_lea.sflag [#allocation6], 1
    %22 = vsyncpa %s21, 0
    %23 = vsyncpa [#allocation11], 0
    %s24 = scalar_lea.sflag [#allocation11], 1
    %25 = vsyncpa %s24, 0
    loop: start=0, step=1, limit=4
    $region2: #{tpu_custom_call.1} parent=1 // loop_pre_header
      _
    $region3: #{tpu_custom_call.1} parent=1 // loop_header
      %s27 = sphi 0, %s31
      %p28 = scmp.ge.s32.totalorder %s27, 4
      %s34 = sphi 0, %s46
      %s35 = sphi 0, %s42
      %s36 = sphi 0, %s34
      %s37 = sphi 0, %s35
      %s38 = sphi 0, %s36
      %s39 = sphi 0, %s37
      %s51 = sphi 0, %s53
      %s54 = sphi 0, %s51
      %s55 = sphi 0, %s54
      %s71 = sphi 0, %s55
      %s79 = sphi 0, %s81
      %s82 = sphi 0, %s79
      %s83 = sphi 0, %s82
      %s99 = sphi 0, %s83
      %s107 = sphi 0, %s109
      %s110 = sphi 0, %s107
      %s111 = sphi 0, %s110
      %s127 = sphi 0, %s111
      %s135 = sphi 0, %s137
      %s138 = sphi 0, %s135
      %s139 = sphi 0, %s138
      %s155 = sphi 0, %s139
    $region4: #{tpu_custom_call.1} parent=1 // loop_header_branch
      %30 = sbr.rel (%p28) target = $region8
    $region5: #{tpu_custom_call.1} parent=1 // loop_body
      %s32 = ssub.s32 %s27, 1
      %s33 = ssub.s32 %s27, 2
      %s40 = sadd.s32 1, %s35
      %p41 = scmp.ge.s32.totalorder %s40, 1
      %s42 = scalar_select %p41, 0, %s40
      %s43 = sadd.s32 1, %s34
      %s44 = scalar_select %p41, %s43, %s34
      %p45 = scmp.ge.s32.totalorder %s44, 2
      %s46 = scalar_select %p45, 0, %s44
      %s47 = ssub.s32 %s34, %s46
      %s48 = ssub.s32 %s35, %s42
      %s49 = sor.u32 %s47, %s48
      %p50 = scmp.eq.s32.totalorder %s49, 0
      %s52 = sadd.s32 %s51, 1
      %s53 = scalar_select %p50, %s51, %s52
      %p56 = pneg %p50
      %p57 = scmp.eq.s32.totalorder %s27, 1
      %p58 = por %p56, %p57
      %p59 = scmp.ne.s32.totalorder %s51, %s54
      %p60 = scmp.eq.s32.totalorder %s27, 0
      %p61 = por %p59, %p60
      %p62 = scmp.ne.s32.totalorder %s51, %s54
      %p63 = scmp.eq.s32.totalorder %s32, 1
      %p64 = por %p62, %p63
      %p65 = scmp.ne.s32.totalorder %s54, %s55
      %p66 = scmp.eq.s32.totalorder %s32, 0
      %p67 = por %p65, %p66
      %p68 = scmp.ne.s32.totalorder %s54, %s55
      %p69 = scmp.eq.s32.totalorder %s33, 1
      %p70 = por %p68, %p69
      %p72 = scmp.ne.s32.totalorder %s55, %s71
      %p73 = scmp.eq.s32.totalorder %s33, 0
      %p74 = por %p72, %p73
      %s75 = ssub.s32 %s34, %s46
      %s76 = ssub.s32 %s35, %s42
      %s77 = sor.u32 %s75, %s76
      %p78 = scmp.eq.s32.totalorder %s77, 0
      %s80 = sadd.s32 %s79, 1
      %s81 = scalar_select %p78, %s79, %s80
      %p84 = pneg %p78
      %p85 = scmp.eq.s32.totalorder %s27, 1
      %p86 = por %p84, %p85
      %p87 = scmp.ne.s32.totalorder %s79, %s82
      %p88 = scmp.eq.s32.totalorder %s27, 0
      %p89 = por %p87, %p88
      %p90 = scmp.ne.s32.totalorder %s79, %s82
      %p91 = scmp.eq.s32.totalorder %s32, 1
      %p92 = por %p90, %p91
      %p93 = scmp.ne.s32.totalorder %s82, %s83
      %p94 = scmp.eq.s32.totalorder %s32, 0
      %p95 = por %p93, %p94
      %p96 = scmp.ne.s32.totalorder %s82, %s83
      %p97 = scmp.eq.s32.totalorder %s33, 1
      %p98 = por %p96, %p97
      %p100 = scmp.ne.s32.totalorder %s83, %s99
      %p101 = scmp.eq.s32.totalorder %s33, 0
      %p102 = por %p100, %p101
      %s103 = ssub.s32 %s34, %s46
      %s104 = ssub.s32 %s35, %s42
      %s105 = sor.u32 %s103, %s104
      %p106 = scmp.eq.s32.totalorder %s105, 0
      %s108 = sadd.s32 %s107, 1
      %s109 = scalar_select %p106, %s107, %s108
      %p112 = pneg %p106
      %p113 = scmp.eq.s32.totalorder %s27, 1
      %p114 = por %p112, %p113
      %p115 = scmp.ne.s32.totalorder %s107, %s110
      %p116 = scmp.eq.s32.totalorder %s27, 0
      %p117 = por %p115, %p116
      %p118 = scmp.ne.s32.totalorder %s107, %s110
      %p119 = scmp.eq.s32.totalorder %s32, 1
      %p120 = por %p118, %p119
      %p121 = scmp.ne.s32.totalorder %s110, %s111
      %p122 = scmp.eq.s32.totalorder %s32, 0
      %p123 = por %p121, %p122
      %p124 = scmp.ne.s32.totalorder %s110, %s111
      %p125 = scmp.eq.s32.totalorder %s33, 1
      %p126 = por %p124, %p125
      %p128 = scmp.ne.s32.totalorder %s111, %s127
      %p129 = scmp.eq.s32.totalorder %s33, 0
      %p130 = por %p128, %p129
      %s131 = ssub.s32 %s34, %s46
      %s132 = ssub.s32 %s35, %s42
      %s133 = sor.u32 %s131, %s132
      %p134 = scmp.eq.s32.totalorder %s133, 0
      %s136 = sadd.s32 %s135, 1
      %s137 = scalar_select %p134, %s135, %s136
      %p140 = pneg %p134
      %p141 = scmp.eq.s32.totalorder %s27, 1
      %p142 = por %p140, %p141
      %p143 = scmp.ne.s32.totalorder %s135, %s138
      %p144 = scmp.eq.s32.totalorder %s27, 0
      %p145 = por %p143, %p144
      %p146 = scmp.ne.s32.totalorder %s135, %s138
      %p147 = scmp.eq.s32.totalorder %s32, 1
      %p148 = por %p146, %p147
      %p149 = scmp.ne.s32.totalorder %s138, %s139
      %p150 = scmp.eq.s32.totalorder %s32, 0
      %p151 = por %p149, %p150
      %p152 = scmp.ne.s32.totalorder %s138, %s139
      %p153 = scmp.eq.s32.totalorder %s33, 1
      %p154 = por %p152, %p153
      %p156 = scmp.ne.s32.totalorder %s139, %s155
      %p157 = scmp.eq.s32.totalorder %s33, 0
      %p158 = por %p156, %p157
      %p159 = scmp.le.s32.totalorder 1, %s27
      %p160 = scmp.lt.s32.totalorder %s27, 3
      %p161 = pnand %p159, %p160
      %p162 = pneg %p161
      // Predicated region
      $region9: #{tpu_custom_call.1} parent=5 // pred_check
        _
      $region10: #{tpu_custom_call.1} parent=5 // pred_check_branch
        %164 = sbr.rel (%p161) target = $region12
      $region11: #{tpu_custom_call.1} parent=5 // pred_region
        %s165 = ssub.s32 %s27, 1
      $region12: #{tpu_custom_call.1} parent=5 // pred_fallthru
        _
      %p166 = scmp.lt.s32.totalorder %s27, 2
      // Predicated region
      $region13: #{tpu_custom_call.1} parent=5 // pred_check
        %p167 = pneg %p166
      $region14: #{tpu_custom_call.1} parent=5 // pred_check_branch
        %169 = sbr.rel (%p167) target = $region16
      $region15: #{tpu_custom_call.1} parent=5 // pred_region
        // Predicated region
        $region17: #{tpu_custom_call.1} parent=15 // pred_check
          %p170 = pneg %p61
        $region18: #{tpu_custom_call.1} parent=15 // pred_check_branch
          %172 = sbr.rel (%p170) target = $region20
        $region19: #{tpu_custom_call.1} parent=15 // pred_region
          %s173 = sand.u32 %s51, 1
          %s174 = scalar_lea.sflag [#allocation5], %s173
          %s175 = sand.u32 %s51, 1
          %s176 = smul.addr %s175, 24
          %s177 = scalar_lea.vmem [#allocation4], %s176
          %s179 = ssub.s32 384, 384
          %180 = vsyncadd %s174, %s179
          %s181 = smul.addr %s34, 3
          %s182 = sadd.s32 %s35, %s181
          %s183 = smul.addr %s182, 128
          %s184 = scalar_lea.hbm %s1, %s183
          %s185 = sshll.u32 %s177, 4
          %s186 = int_to_ptr.vmem [resolvable:$true] %s185
          %191 = dma.hbm_to_vmem [thread:$0]  %s184, 384, %s186, %s174, 128, 128, 8
        $region20: #{tpu_custom_call.1} parent=15 // pred_fallthru
          _
        // Predicated region
        $region21: #{tpu_custom_call.1} parent=15 // pred_check
          %p192 = pneg %p89
        $region22: #{tpu_custom_call.1} parent=15 // pred_check_branch
          %194 = sbr.rel (%p192) target = $region24
        $region23: #{tpu_custom_call.1} parent=15 // pred_region
          %s195 = sand.u32 %s79, 1
          %s196 = scalar_lea.sflag [#allocation8], %s195
          %s197 = sand.u32 %s79, 1
          %s198 = smul.addr %s197, 32
          %s199 = scalar_lea.vmem [#allocation7], %s198
          %s201 = ssub.s32 512, 512
          %202 = vsyncadd %s196, %s201
          %s203 = smul.addr %s34, 4
          %s204 = sadd.s32 %s35, %s203
          %s205 = smul.addr %s204, 128
          %s206 = scalar_lea.hbm %s2, %s205
          %s207 = sshll.u32 %s199, 4
          %s208 = int_to_ptr.vmem [resolvable:$true] %s207
          %213 = dma.hbm_to_vmem [thread:$0]  %s206, 512, %s208, %s196, 128, 128, 8
        $region24: #{tpu_custom_call.1} parent=15 // pred_fallthru
          _
      $region16: #{tpu_custom_call.1} parent=5 // pred_fallthru
        _
      %p214 = scmp.le.s32.totalorder 1, %s27
      %p215 = scmp.lt.s32.totalorder %s27, 3
      %p216 = pnand %p214, %p215
      %p217 = pneg %p216
      // Predicated region
      $region25: #{tpu_custom_call.1} parent=5 // pred_check
        _
      $region26: #{tpu_custom_call.1} parent=5 // pred_check_branch
        %219 = sbr.rel (%p216) target = $region28
      $region27: #{tpu_custom_call.1} parent=5 // pred_region
        %s220 = ssub.s32 %s27, 1
        %s221 = sand.u32 %s54, 1
        %s222 = scalar_lea.sflag [#allocation5], %s221
        %s223 = sand.u32 %s54, 1
        %s224 = smul.addr %s223, 24
        %s225 = scalar_lea.vmem [#allocation4], %s224
        // Predicated region
        $region29: #{tpu_custom_call.1} parent=27 // pred_check
          %p226 = pneg %p67
        $region30: #{tpu_custom_call.1} parent=27 // pred_check_branch
          %228 = sbr.rel (%p226) target = $region32
        $region31: #{tpu_custom_call.1} parent=27 // pred_region
          %229 = dma.done %s222, 384
        $region32: #{tpu_custom_call.1} parent=27 // pred_fallthru
          _
        %s230 = sand.u32 %s82, 1
        %s231 = scalar_lea.sflag [#allocation8], %s230
        %s232 = sand.u32 %s82, 1
        %s233 = smul.addr %s232, 32
        %s234 = scalar_lea.vmem [#allocation7], %s233
        // Predicated region
        $region33: #{tpu_custom_call.1} parent=27 // pred_check
          %p235 = pneg %p95
        $region34: #{tpu_custom_call.1} parent=27 // pred_check_branch
          %237 = sbr.rel (%p235) target = $region36
        $region35: #{tpu_custom_call.1} parent=27 // pred_region
          %238 = dma.done %s231, 512
        $region36: #{tpu_custom_call.1} parent=27 // pred_fallthru
          _
        %s239 = sand.u32 %s54, 1
        %s240 = scalar_lea.sflag [#allocation5], %s239
        %s241 = sand.u32 %s54, 1
        %s242 = smul.addr %s241, 24
        %s243 = scalar_lea.vmem [#allocation4], %s242
        %p244 = pneg %p67
        %p245 = pneg %p64
        %s246 = sand.u32 %s82, 1
        %s247 = scalar_lea.sflag [#allocation8], %s246
        %s248 = sand.u32 %s82, 1
        %s249 = smul.addr %s248, 32
        %s250 = scalar_lea.vmem [#allocation7], %s249
        %p251 = pneg %p95
        %p252 = pneg %p92
        %p253 = pneg %p123
        %p254 = pneg %p120
        %s255 = sand.u32 %s110, 1
        %s256 = scalar_lea.sflag [#allocation6], %s255
        %s257 = sand.u32 %s110, 1
        %s258 = smul.addr %s257, 24
        %s259 = scalar_lea.vmem [#allocation9], %s258
        %p260 = pneg %p151
        %p261 = pneg %p148
        %s262 = sand.u32 %s138, 1
        %s263 = scalar_lea.sflag [#allocation11], %s262
        %s264 = sand.u32 %s138, 1
        %s265 = smul.addr %s264, 32
        %s266 = scalar_lea.vmem [#allocation10], %s265
        %s267 = smul.u32 %s36, 128
        %s268 = sld [smem:[#allocation3 + %s267]]
        %s269 = sadd.s32 %s267, 1
        %s270 = sld [smem:[#allocation3 + %s269]]
        %s271 = sadd.s32 %s267, 2
        %s272 = sld [smem:[#allocation3 + %s271]]
        %s273 = sadd.s32 %s267, 3
        %s274 = sld [smem:[#allocation3 + %s273]]
        %s275 = sadd.s32 %s267, 4
        %s276 = sld [smem:[#allocation3 + %s275]]
        %s277 = sadd.s32 %s267, 5
        %s278 = sld [smem:[#allocation3 + %s277]]
        %v279 = vld [vmem:[%s225] sm:$0xff]
        %v280 = vstv %s268
        %v281 = vsub.f32 %v279, %v280
        %s282 = scalar_lea.vmem %s225, 8 [#allocation4]
        %v283 = vld [vmem:[%s282] sm:$0xff]
        %s284 = scalar_lea.vmem %s225, 16 [#allocation4]
        %v285 = vld [vmem:[%s284] sm:$0xff]
        %v286 = vstv %s270
        %v287 = vsub.f32 %v285, %v286
        %v288 = vstv %s276
        %v289 = vmul.f32 %v288, %v287
        %v290 = vstv %s278
        %v291 = vmul.f32 %v290, %v283
        %v292 = vsub.f32 %v289, %v291
        %v293 = vmul.f32 %v292, 2.0
        %v294 = vmul.f32 %v290, %v281
        %v295 = vstv %s274
        %v296 = vmul.f32 %v295, %v287
        %v297 = vsub.f32 %v294, %v296
        %v298 = vmul.f32 %v297, 2.0
        %v299 = vmul.f32 %v295, %v283
        %v300 = vmul.f32 %v288, %v281
        %v301 = vsub.f32 %v299, %v300
        %v302 = vmul.f32 %v301, 2.0
        %v303 = vstv %s272
        %v304 = vmul.f32 %v303, %v293
        %v305 = vadd.f32 %v281, %v304
        %v306 = vmul.f32 %v288, %v302
        %v307 = vmul.f32 %v290, %v298
        %v308 = vsub.f32 %v306, %v307
        %v309 = vadd.f32 %v305, %v308
        %310 = vst [vmem:[%s259] sm:$0xff] %v309
        %v311 = vmul.f32 %v303, %v298
        %v312 = vadd.f32 %v283, %v311
        %v313 = vmul.f32 %v290, %v293
        %v314 = vmul.f32 %v295, %v302
        %v315 = vsub.f32 %v313, %v314
        %v316 = vadd.f32 %v312, %v315
        %s317 = scalar_lea.vmem %s259, 8 [#allocation9]
        %318 = vst [vmem:[%s317] sm:$0xff] %v316
        %v319 = vmul.f32 %v303, %v302
        %v320 = vadd.f32 %v287, %v319
        %v321 = vmul.f32 %v295, %v298
        %v322 = vmul.f32 %v288, %v293
        %v323 = vsub.f32 %v321, %v322
        %v324 = vadd.f32 %v320, %v323
        %s325 = scalar_lea.vmem %s259, 16 [#allocation9]
        %326 = vst [vmem:[%s325] sm:$0xff] %v324
        %v327 = vld [vmem:[%s234] sm:$0xff]
        %s328 = scalar_lea.vmem %s234, 8 [#allocation7]
        %v329 = vld [vmem:[%s328] sm:$0xff]
        %s330 = scalar_lea.vmem %s234, 16 [#allocation7]
        %v331 = vld [vmem:[%s330] sm:$0xff]
        %s332 = scalar_lea.vmem %s234, 24 [#allocation7]
        %v333 = vld [vmem:[%s332] sm:$0xff]
        %v334 = vmul.f32 %v303, %v327
        %v335 = vmul.f32 %v295, %v329
        %v336 = vsub.f32 %v334, %v335
        %v337 = vmul.f32 %v288, %v331
        %v338 = vsub.f32 %v336, %v337
        %v339 = vmul.f32 %v290, %v333
        %v340 = vsub.f32 %v338, %v339
        %341 = vst [vmem:[%s266] sm:$0xff] %v340
        %v342 = vmul.f32 %v303, %v329
        %v343 = vmul.f32 %v295, %v327
        %v344 = vadd.f32 %v342, %v343
        %v345 = vmul.f32 %v288, %v333
        %v346 = vadd.f32 %v344, %v345
        %v347 = vmul.f32 %v290, %v331
        %v348 = vsub.f32 %v346, %v347
        %s349 = scalar_lea.vmem %s266, 8 [#allocation10]
        %350 = vst [vmem:[%s349] sm:$0xff] %v348
        %v351 = vmul.f32 %v303, %v331
        %v352 = vmul.f32 %v295, %v333
        %v353 = vsub.f32 %v351, %v352
        %v354 = vmul.f32 %v288, %v327
        %v355 = vadd.f32 %v353, %v354
        %v356 = vmul.f32 %v290, %v329
        %v357 = vadd.f32 %v355, %v356
        %s358 = scalar_lea.vmem %s266, 16 [#allocation10]
        %359 = vst [vmem:[%s358] sm:$0xff] %v357
        %v360 = vmul.f32 %v303, %v333
        %v361 = vmul.f32 %v295, %v331
        %v362 = vadd.f32 %v360, %v361
        %v363 = vmul.f32 %v288, %v329
        %v364 = vsub.f32 %v362, %v363
        %v365 = vmul.f32 %v290, %v327
        %v366 = vadd.f32 %v364, %v365
        %s367 = scalar_lea.vmem %s266, 24 [#allocation10]
        %368 = vst [vmem:[%s367] sm:$0xff] %v366
        %s369 = sand.u32 %s110, 1
        %s370 = scalar_lea.sflag [#allocation6], %s369
        %s371 = sand.u32 %s110, 1
        %s372 = smul.addr %s371, 24
        %s373 = scalar_lea.vmem [#allocation9], %s372
        %s374 = sand.u32 %s138, 1
        %s375 = scalar_lea.sflag [#allocation11], %s374
        %s376 = sand.u32 %s138, 1
        %s377 = smul.addr %s376, 32
        %s378 = scalar_lea.vmem [#allocation10], %s377
        // Predicated region
        $region37: #{tpu_custom_call.1} parent=27 // pred_check
          %p379 = pneg %p120
        $region38: #{tpu_custom_call.1} parent=27 // pred_check_branch
          %381 = sbr.rel (%p379) target = $region40
        $region39: #{tpu_custom_call.1} parent=27 // pred_region
          %s383 = ssub.s32 384, 384
          %384 = vsyncadd %s370, %s383
          %s385 = smul.addr %s36, 3
          %s386 = sadd.s32 %s37, %s385
          %s387 = smul.addr %s386, 128
          %s388 = scalar_lea.hbm %s3, %s387
          %s389 = sshll.u32 %s373, 4
          %s390 = int_to_ptr.vmem [resolvable:$true] %s389
          %395 = dma.vmem_to_hbm [thread:$0]  %s390, 384, %s388, %s370, 128, 128, 8
        $region40: #{tpu_custom_call.1} parent=27 // pred_fallthru
          _
        // Predicated region
        $region41: #{tpu_custom_call.1} parent=27 // pred_check
          %p396 = pneg %p148
        $region42: #{tpu_custom_call.1} parent=27 // pred_check_branch
          %398 = sbr.rel (%p396) target = $region44
        $region43: #{tpu_custom_call.1} parent=27 // pred_region
          %s400 = ssub.s32 512, 512
          %401 = vsyncadd %s375, %s400
          %s402 = smul.addr %s36, 4
          %s403 = sadd.s32 %s37, %s402
          %s404 = smul.addr %s403, 128
          %s405 = scalar_lea.hbm %s4, %s404
          %s406 = sshll.u32 %s378, 4
          %s407 = int_to_ptr.vmem [resolvable:$true] %s406
          %412 = dma.vmem_to_hbm [thread:$0]  %s407, 512, %s405, %s375, 128, 128, 8
        $region44: #{tpu_custom_call.1} parent=27 // pred_fallthru
          _
      $region28: #{tpu_custom_call.1} parent=5 // pred_fallthru
        _
      %p413 = scmp.le.s32.totalorder 2, %s27
      // Predicated region
      $region45: #{tpu_custom_call.1} parent=5 // pred_check
        %p414 = pneg %p413
      $region46: #{tpu_custom_call.1} parent=5 // pred_check_branch
        %416 = sbr.rel (%p414) target = $region48
      $region47: #{tpu_custom_call.1} parent=5 // pred_region
        %s417 = ssub.s32 %s27, 2
        // Predicated region
        $region49: #{tpu_custom_call.1} parent=47 // pred_check
          %p418 = pneg %p126
        $region50: #{tpu_custom_call.1} parent=47 // pred_check_branch
          %420 = sbr.rel (%p418) target = $region52
        $region51: #{tpu_custom_call.1} parent=47 // pred_region
          %s421 = sand.u32 %s111, 1
          %s422 = scalar_lea.sflag [#allocation6], %s421
          %s423 = sand.u32 %s111, 1
          %s424 = smul.addr %s423, 24
          %s425 = scalar_lea.vmem [#allocation9], %s424
          %426 = dma.done %s422, 384
        $region52: #{tpu_custom_call.1} parent=47 // pred_fallthru
          _
        // Predicated region
        $region53: #{tpu_custom_call.1} parent=47 // pred_check
          %p427 = pneg %p154
        $region54: #{tpu_custom_call.1} parent=47 // pred_check_branch
          %429 = sbr.rel (%p427) target = $region56
        $region55: #{tpu_custom_call.1} parent=47 // pred_region
          %s430 = sand.u32 %s139, 1
          %s431 = scalar_lea.sflag [#allocation11], %s430
          %s432 = sand.u32 %s139, 1
          %s433 = smul.addr %s432, 32
          %s434 = scalar_lea.vmem [#allocation10], %s433
          %435 = dma.done %s431, 512
        $region56: #{tpu_custom_call.1} parent=47 // pred_fallthru
          _
      $region48: #{tpu_custom_call.1} parent=5 // pred_fallthru
        _
    $region6: #{tpu_custom_call.1} parent=1 // loop_footer
      %s31 = sadd.s32 1, %s27
    $region7: #{tpu_custom_call.1} parent=1 // loop_footer_branch
      %26 = sbr.rel target = $region3
    $region8: #{tpu_custom_call.1} parent=1 // loop_exit
      _
    %436 = vsyncpa [#allocation5], 1
    %s437 = scalar_lea.sflag [#allocation5], 1
    %438 = vsyncpa %s437, 1
    %439 = vsyncpa [#allocation8], 1
    %s440 = scalar_lea.sflag [#allocation8], 1
    %441 = vsyncpa %s440, 1
    %442 = vsyncpa [#allocation6], 1
    %s443 = scalar_lea.sflag [#allocation6], 1
    %444 = vsyncpa %s443, 1
    %445 = vsyncpa [#allocation11], 1
    %s446 = scalar_lea.sflag [#allocation11], 1
    %447 = vsyncpa %s446, 1

</llo_original>
